<compile_context>
chip_gen: v5e
topology: v5e:2x2
jax: 0.10.0
libtpu: 0.0.40
codegen_flags: <defaults>
</compile_context>

<pallas_src>
import functools

import jax
import jax.numpy as jnp
from jax import lax
from jax.experimental import pallas as pl
from jax.experimental.pallas import tpu as pltpu


def _yolo_kernel(mul_ref, add_ref, x_ref, o_ref, *, rows_per_block):
    """One grid step processes `rows_per_block` (batch, anchor) slabs.

    mul_ref : (rows_per_block, no, 1) f32  per-slab/per-channel multiplier
    add_ref : (no, s) f32                  grid-cell offsets * stride on rows 0/1
                                           (constant across grid -> revolving buffer)
    x_ref   : (rows_per_block, no, s)      channel-major free view of NCHW input
    o_ref   : (rows_per_block, s, no)      channel-minor (torch output layout)
    """
    no, s = x_ref.shape[1], x_ref.shape[2]

    # wh-channel mask (channels 2,3), built at full operand shape so every
    # select is a same-shape op (no bool broadcasts).
    ch = lax.broadcasted_iota(jnp.int32, (rows_per_block, no, s), 1)
    is_wh = (ch >= 2) & (ch < 4)

    v = x_ref[...].astype(jnp.float32)            # lane-dense load (s on lanes)

    # Exactly ONE transcendental chain per element:
    #   wh rows : exp(v)
    #   others  : sigmoid(v) = 1 / (1 + exp(-v))   (stable, matches torch)
    e = jnp.exp(jnp.where(is_wh, v, -v))
    sig = 1.0 / (1.0 + e)

    core = jnp.where(is_wh, e, sig) * mul_ref[...]     # (rpb,no,1) lane-broadcast
    add = add_ref[...]                                  # (no, s)

    # Fused layout change: channel-major -> channel-minor, done in vregs/XLU,
    # no extra HBM pass.  Short static unroll keeps the 2-D transpose on the
    # known-good lowering path.
    for j in range(rows_per_block):
        o_ref[j] = jnp.transpose(core[j] + add).astype(o_ref.dtype)


def _pick_rows_per_block(n_slabs, slab_bytes, *, target_bytes=2 << 20, hard_cap=8):
    """Largest divisor of n_slabs keeping blocks ~target_bytes and grid >= 2."""
    cap = max(1, min(hard_cap, target_bytes // max(1, slab_bytes)))
    if n_slabs >= 2:
        cap = min(cap, n_slabs // 2)          # keep >= 2 grid steps (megacore)
    cap = max(1, cap)
    best = 1
    for d in range(1, cap + 1):
        if n_slabs % d == 0:
            best = d
    return best


def yolo_layer_forward(x, anchors, num_classes, img_size, training=False):
    """JAX/Pallas equivalent of YOLOLayer.forward.

    x       : (bs, num_anchors*(num_classes+5), ny, nx)  NCHW
    anchors : (num_anchors, 2)
    returns : training -> (bs, na, ny, nx, no)
              eval     -> (bs, na*ny*nx, no)
    """
    bs, ch, ny, nx = x.shape
    na = anchors.shape[0]
    no = num_classes + 5
    assert ch == na * no, "channel dim must equal num_anchors*(num_classes+5)"
    stride = img_size // ny

    if training:
        # torch: view + permute + contiguous; no elementwise math in training mode
        return jnp.transpose(x.reshape(bs, na, no, ny, nx), (0, 1, 3, 4, 2))

    s = ny * nx
    n_slabs = bs * na
    # Free view only (no data movement): (bs, na*no, ny, nx) -> (bs*na, no, ny*nx)
    x_cm = x.reshape(n_slabs, no, s)

    # ---- tiny precomputed tables (negligible XLA work, read once) ----------
    cidx = jnp.arange(no)
    base = jnp.where(cidx < 2, jnp.float32(stride), jnp.float32(1.0))       # (no,)
    aw = anchors[:, 0:1].astype(jnp.float32)                                # (na,1)
    ah = anchors[:, 1:2].astype(jnp.float32)
    mul_a = jnp.where(cidx[None, :] == 2, aw,
                      jnp.where(cidx[None, :] == 3, ah, base[None, :]))     # (na,no)
    # slab index = b*na + a  -> row i of the tiled table has anchor (i % na)
    mul = jnp.tile(mul_a, (bs, 1)).reshape(n_slabs, no, 1)

    p = jnp.arange(s)
    col = (p % nx).astype(jnp.float32) * stride                             # xv*stride
    row = (p // nx).astype(jnp.float32) * stride                            # yv*stride
    add = jnp.zeros((no, s), jnp.float32).at[0].set(col).at[1].set(row)

    rows_per_block = _pick_rows_per_block(n_slabs, s * no * x.dtype.itemsize)
    grid = n_slabs // rows_per_block

    kern = functools.partial(_yolo_kernel, rows_per_block=rows_per_block)
    out = pl.pallas_call(
        kern,
        out_shape=jax.ShapeDtypeStruct((n_slabs, s, no), x.dtype),
        grid=(grid,),
        in_specs=[
            pl.BlockSpec((rows_per_block, no, 1), lambda i: (i, 0, 0)),
            pl.BlockSpec((no, s), lambda i: (0, 0)),          # constant -> resident
            pl.BlockSpec((rows_per_block, no, s), lambda i: (i, 0, 0)),
        ],
        out_specs=pl.BlockSpec((rows_per_block, s, no), lambda i: (i, 0, 0)),
        compiler_params=pltpu.CompilerParams(
            dimension_semantics=("parallel",),
            vmem_limit_bytes=32 * 1024 * 1024,
        ),
    )(mul, add, x_cm)

    # Free view: (bs*na, s, no) -> (bs, na*s, no)
    return out.reshape(bs, na * s, no)


def _reference_forward(x, anchors, num_classes, img_size):
    """Pure-JAX replica of the torch eval-mode forward, for verification."""
    bs, _, ny, nx = x.shape
    na = anchors.shape[0]
    no = num_classes + 5
    stride = img_size // ny
    xp = jnp.transpose(x.reshape(bs, na, no, ny, nx), (0, 1, 3, 4, 2))
    yv, xv = jnp.meshgrid(jnp.arange(ny), jnp.arange(nx), indexing="ij")
    grid = jnp.stack((xv, yv), axis=2).reshape(1, 1, ny, nx, 2).astype(jnp.float32)
    anchor_grid = anchors.reshape(1, na, 1, 1, 2).astype(jnp.float32)
    xy = (jax.nn.sigmoid(xp[..., 0:2]) + grid) * stride
    wh = jnp.exp(xp[..., 2:4]) * anchor_grid
    rest = jax.nn.sigmoid(xp[..., 4:])
    return jnp.concatenate([xy, wh, rest], axis=-1).reshape(bs, -1, no)


if __name__ == "__main__":
    # deterministic synthetic setup (no checkpoint): 3 anchors, 3 classes
    anchors_list = [(10.0, 13.0), (16.0, 30.0), (33.0, 23.0)]
    num_classes = 3
    na = len(anchors_list)
    no = num_classes + 5                    # 8

    bs, ny, nx = 2, 16, 16
    img_size = 64                           # stride = 64 // 16 = 4

    key = jax.random.PRNGKey(0)
    x = jax.random.normal(key, (bs, na * no, ny, nx), dtype=jnp.float32)
    anchors = jnp.asarray(anchors_list, dtype=jnp.float32)   # (na, 2)

    out = yolo_layer_forward(x, anchors, num_classes, img_size, training=False)
    out = jax.block_until_ready(out)

    ref = _reference_forward(x, anchors, num_classes, img_size)
    assert out.shape == (bs, na * ny * nx, no)
    assert jnp.allclose(out, ref, atol=1e-5, rtol=1e-5), \
        float(jnp.max(jnp.abs(out - ref)))

    print("KERNEL_OK")
</pallas_src>

<mosaic_0001>
module attributes {stable_mosaic.version = 11 : i64} {
  func.func @_yolo_kernel(%arg0: i32, %arg1: memref<3x8x1xf32, #tpu.memory_space<vmem>>, %arg2: memref<8x256xf32, #tpu.memory_space<vmem>>, %arg3: memref<3x8x256xf32, #tpu.memory_space<vmem>>, %arg4: memref<3x256x8xf32, #tpu.memory_space<vmem>>) attributes {dimension_semantics = [#tpu.dimension_semantics<parallel>], iteration_bounds = array<i64: 2>, scalar_prefetch = 0 : i64, scratch_operands = 0 : i64, tpu.core_type = #tpu.core_type<tc>, window_params = [{transform_indices = @transform_0, window_bounds = array<i64: 3, 8, 1>}, {pipeline_mode = #tpu.pipeline_mode<synchronous>, transform_indices = @transform_1, window_bounds = array<i64: 8, 256>}, {transform_indices = @transform_2, window_bounds = array<i64: 3, 8, 256>}, {transform_indices = @transform_3, window_bounds = array<i64: 3, 256, 8>}]} {
    %0 = tpu.iota {dimensions = array<i32: 1>} : vector<3x8x256xi32>
    %c2_i32 = arith.constant 2 : i32
    %1 = vector.broadcast %c2_i32 : i32 to vector<3x8x256xi32>
    %2 = arith.cmpi sge, %0, %1 : vector<3x8x256xi32>
    %c4_i32 = arith.constant 4 : i32
    %3 = vector.broadcast %c4_i32 : i32 to vector<3x8x256xi32>
    %4 = arith.cmpi slt, %0, %3 : vector<3x8x256xi32>
    %5 = arith.andi %2, %4 : vector<3x8x256xi1>
    %c0 = arith.constant 0 : index
    %c0_0 = arith.constant 0 : index
    %c0_1 = arith.constant 0 : index
    %6 = vector.load %arg3[%c0, %c0_0, %c0_1] : memref<3x8x256xf32, #tpu.memory_space<vmem>>, vector<3x8x256xf32>
    %cst = arith.constant 0.000000e+00 : f32
    %7 = vector.broadcast %cst : f32 to vector<3x8x256xf32>
    %8 = arith.subf %7, %6 : vector<3x8x256xf32>
    %9 = arith.select %5, %6, %8 : vector<3x8x256xi1>, vector<3x8x256xf32>
    %10 = math.exp %9 : vector<3x8x256xf32>
    %cst_2 = arith.constant 1.000000e+00 : f32
    %11 = vector.broadcast %cst_2 : f32 to vector<3x8x256xf32>
    %12 = arith.addf %11, %10 : vector<3x8x256xf32>
    %cst_3 = arith.constant 1.000000e+00 : f32
    %13 = vector.broadcast %cst_3 : f32 to vector<3x8x256xf32>
    %14 = arith.divf %13, %12 : vector<3x8x256xf32>
    %15 = arith.select %5, %10, %14 : vector<3x8x256xi1>, vector<3x8x256xf32>
    %c0_4 = arith.constant 0 : index
    %c0_5 = arith.constant 0 : index
    %c0_6 = arith.constant 0 : index
    %16 = vector.load %arg1[%c0_4, %c0_5, %c0_6] : memref<3x8x1xf32, #tpu.memory_space<vmem>>, vector<3x8x1xf32>
    %17 = vector.broadcast %16 : vector<3x8x1xf32> to vector<3x8x256xf32>
    %18 = arith.mulf %15, %17 : vector<3x8x256xf32>
    %c0_7 = arith.constant 0 : index
    %c0_8 = arith.constant 0 : index
    %19 = vector.load %arg2[%c0_7, %c0_8] : memref<8x256xf32, #tpu.memory_space<vmem>>, vector<8x256xf32>
    %20 = vector.extract_strided_slice %18 {offsets = [0, 0, 0], sizes = [1, 8, 256], strides = [1, 1, 1]} : vector<3x8x256xf32> to vector<1x8x256xf32>
    %21 = vector.shape_cast %20 : vector<1x8x256xf32> to vector<8x256xf32>
    %22 = arith.addf %21, %19 : vector<8x256xf32>
    %23 = tpu.transpose %22, [1, 0] : vector<8x256xf32> -> vector<256x8xf32>
    %c0_9 = arith.constant 0 : index
    %c0_10 = arith.constant 0 : index
    %c0_11 = arith.constant 0 : index
    %24 = vector.load %arg4[%c0_9, %c0_10, %c0_11] : memref<3x256x8xf32, #tpu.memory_space<vmem>>, vector<1x256x8xf32>
    %25 = vector.shape_cast %24 : vector<1x256x8xf32> to vector<256x8xf32>
    %26 = vector.shape_cast %23 : vector<256x8xf32> to vector<1x256x8xf32>
    tpu.vector_store %arg4[%c0_9, %c0_10, %c0_11], %26 {strides = array<i32>} : memref<3x256x8xf32, #tpu.memory_space<vmem>>, vector<1x256x8xf32>,
    %27 = vector.extract_strided_slice %18 {offsets = [1, 0, 0], sizes = [1, 8, 256], strides = [1, 1, 1]} : vector<3x8x256xf32> to vector<1x8x256xf32>
    %28 = vector.shape_cast %27 : vector<1x8x256xf32> to vector<8x256xf32>
    %29 = arith.addf %28, %19 : vector<8x256xf32>
    %30 = tpu.transpose %29, [1, 0] : vector<8x256xf32> -> vector<256x8xf32>
    %c1 = arith.constant 1 : index
    %c0_12 = arith.constant 0 : index
    %c0_13 = arith.constant 0 : index
    %31 = vector.load %arg4[%c1, %c0_12, %c0_13] : memref<3x256x8xf32, #tpu.memory_space<vmem>>, vector<1x256x8xf32>
    %32 = vector.shape_cast %31 : vector<1x256x8xf32> to vector<256x8xf32>
    %33 = vector.shape_cast %30 : vector<256x8xf32> to vector<1x256x8xf32>
    tpu.vector_store %arg4[%c1, %c0_12, %c0_13], %33 {strides = array<i32>} : memref<3x256x8xf32, #tpu.memory_space<vmem>>, vector<1x256x8xf32>,
    %34 = vector.extract_strided_slice %18 {offsets = [2, 0, 0], sizes = [1, 8, 256], strides = [1, 1, 1]} : vector<3x8x256xf32> to vector<1x8x256xf32>
    %35 = vector.shape_cast %34 : vector<1x8x256xf32> to vector<8x256xf32>
    %36 = arith.addf %35, %19 : vector<8x256xf32>
    %37 = tpu.transpose %36, [1, 0] : vector<8x256xf32> -> vector<256x8xf32>
    %c2 = arith.constant 2 : index
    %c0_14 = arith.constant 0 : index
    %c0_15 = arith.constant 0 : index
    %38 = vector.load %arg4[%c2, %c0_14, %c0_15] : memref<3x256x8xf32, #tpu.memory_space<vmem>>, vector<1x256x8xf32>
    %39 = vector.shape_cast %38 : vector<1x256x8xf32> to vector<256x8xf32>
    %40 = vector.shape_cast %37 : vector<256x8xf32> to vector<1x256x8xf32>
    tpu.vector_store %arg4[%c2, %c0_14, %c0_15], %40 {strides = array<i32>} : memref<3x256x8xf32, #tpu.memory_space<vmem>>, vector<1x256x8xf32>,
    return
  }
  func.func @transform_0(%arg0: i32) -> (i32, i32, i32) {
    %c0_i32 = arith.constant 0 : i32
    %c0_i32_0 = arith.constant 0 : i32
    %c0_i32_1 = arith.constant 0 : i32
    return %arg0, %c0_i32, %c0_i32_0 : i32, i32, i32
  }
  func.func @transform_1(%arg0: i32) -> (i32, i32) {
    %c0_i32 = arith.constant 0 : i32
    %c0_i32_0 = arith.constant 0 : i32
    %c0_i32_1 = arith.constant 0 : i32
    return %c0_i32, %c0_i32_0 : i32, i32
  }
  func.func @transform_2(%arg0: i32) -> (i32, i32, i32) {
    %c0_i32 = arith.constant 0 : i32
    %c0_i32_0 = arith.constant 0 : i32
    %c0_i32_1 = arith.constant 0 : i32
    return %arg0, %c0_i32, %c0_i32_0 : i32, i32, i32
  }
  func.func @transform_3(%arg0: i32) -> (i32, i32, i32) {
    %c0_i32 = arith.constant 0 : i32
    %c0_i32_0 = arith.constant 0 : i32
    %c0_i32_1 = arith.constant 0 : i32
    return %arg0, %c0_i32, %c0_i32_0 : i32, i32, i32
  }
}

</mosaic_0001>

<llo_original>
// kernel: tpu_custom_call.1
$region0: #{tpu_custom_call.1}
  #allocation0 [shape = 'u32[]', space=smem, size = 0x4, offset = 0x4, fixed_abs, tag = 'smem constant byte address 0x4 - core index']
  #allocation1 [shape = 'u32[72,128]{1,0:T(1,128)}', space=vmem, size = 0x9000, scoped, tag = 'internal scratch']
  %s0 = inlined_call_operand.vmem [shape: f32[6,8,1], index: 0, kind: input, shape index: {}]
  %s1 = inlined_call_operand.vmem [shape: f32[8,256], index: 1, kind: input, shape index: {}]
  %s2 = inlined_call_operand.hbm [shape: f32[6,8,256], index: 2, kind: input, shape index: {}]
  %s3 = inlined_call_operand.vmem [shape: f32[6,256,8], index: 3, kind: output, shape index: {}]
  %s4 = sld [smem:[#allocation0]]
  $region49: #{tpu_custom_call.1} parent=0
    _
  %s6 = ssub.s32 1, %s4
  %s7 = scalar_select 0, %s6, %s4
  $region1: #{tpu_custom_call.1} parent=0
    #allocation2 [shape = 'u8[49152]{0}', space=vmem, size = 0xc000, scoped, tag = 'input window, operand 2']
    #allocation3 [shape = 's32[2]{0}', space=sflag, size = 0x8, scoped, tag = 'scoped memory for tpu_custom_call.1']
    %8 = vsyncpa [#allocation3], 0
    %s9 = scalar_lea.sflag [#allocation3], 1
    %10 = vsyncpa %s9, 0
    loop: start=0, step=1, limit=4
    $region2: #{tpu_custom_call.1} parent=1 // loop_pre_header
      _
    $region3: #{tpu_custom_call.1} parent=1 // loop_header
      %s12 = sphi 0, %s16
      %p13 = scmp.ge.s32.totalorder %s12, 4
      %s22 = sphi 0, %s24
      %s25 = sphi 0, %s22
      %s26 = sphi 0, %s25
      %s42 = sphi 0, %s26
      %s46 = sphi 0, %s46
      %s48 = sphi 0, %s46
      %s49 = sphi 0, %s48
      %s63 = sphi 0, %s49
      %s69 = sphi 0, %s71
      %s72 = sphi 0, %s69
      %s73 = sphi 0, %s72
      %s89 = sphi 0, %s73
      %s95 = sphi 0, %s97
      %s98 = sphi 0, %s95
      %s99 = sphi 0, %s98
      %s115 = sphi 0, %s99
    $region4: #{tpu_custom_call.1} parent=1 // loop_header_branch
      %15 = sbr.rel (%p13) target = $region8
    $region5: #{tpu_custom_call.1} parent=1 // loop_body
      %s17 = ssub.s32 %s12, 1
      %s18 = ssub.s32 %s12, 2
      %s19 = sadd.s32 %s12, 1
      %s20 = ssub.s32 %s12, %s19
      %p21 = scmp.eq.s32.totalorder %s20, 0
      %s23 = sadd.s32 %s22, 1
      %s24 = scalar_select %p21, %s22, %s23
      %p27 = pneg %p21
      %p28 = scmp.eq.s32.totalorder %s12, 1
      %p29 = por %p27, %p28
      %p30 = scmp.ne.s32.totalorder %s22, %s25
      %p31 = scmp.eq.s32.totalorder %s12, 0
      %p32 = por %p30, %p31
      %p33 = scmp.ne.s32.totalorder %s22, %s25
      %p34 = scmp.eq.s32.totalorder %s17, 1
      %p35 = por %p33, %p34
      %p36 = scmp.ne.s32.totalorder %s25, %s26
      %p37 = scmp.eq.s32.totalorder %s17, 0
      %p38 = por %p36, %p37
      %p39 = scmp.ne.s32.totalorder %s25, %s26
      %p40 = scmp.eq.s32.totalorder %s18, 1
      %p41 = por %p39, %p40
      %p43 = scmp.ne.s32.totalorder %s26, %s42
      %p44 = scmp.eq.s32.totalorder %s18, 0
      %p45 = por %p43, %p44
      %s47 = sadd.s32 %s46, 1
      %p50 = scmp.eq.s32.totalorder %s12, 1
      %p51 = scmp.ne.s32.totalorder %s46, %s48
      %p52 = scmp.eq.s32.totalorder %s12, 0
      %p53 = por %p51, %p52
      %p54 = scmp.ne.s32.totalorder %s46, %s48
      %p55 = scmp.eq.s32.totalorder %s17, 1
      %p56 = por %p54, %p55
      %p57 = scmp.ne.s32.totalorder %s48, %s49
      %p58 = scmp.eq.s32.totalorder %s17, 0
      %p59 = por %p57, %p58
      %p60 = scmp.ne.s32.totalorder %s48, %s49
      %p61 = scmp.eq.s32.totalorder %s18, 1
      %p62 = por %p60, %p61
      %p64 = scmp.ne.s32.totalorder %s49, %s63
      %p65 = scmp.eq.s32.totalorder %s18, 0
      %p66 = por %p64, %p65
      %s67 = ssub.s32 %s12, %s19
      %p68 = scmp.eq.s32.totalorder %s67, 0
      %s70 = sadd.s32 %s69, 1
      %s71 = scalar_select %p68, %s69, %s70
      %p74 = pneg %p68
      %p75 = scmp.eq.s32.totalorder %s12, 1
      %p76 = por %p74, %p75
      %p77 = scmp.ne.s32.totalorder %s69, %s72
      %p78 = scmp.eq.s32.totalorder %s12, 0
      %p79 = por %p77, %p78
      %p80 = scmp.ne.s32.totalorder %s69, %s72
      %p81 = scmp.eq.s32.totalorder %s17, 1
      %p82 = por %p80, %p81
      %p83 = scmp.ne.s32.totalorder %s72, %s73
      %p84 = scmp.eq.s32.totalorder %s17, 0
      %p85 = por %p83, %p84
      %p86 = scmp.ne.s32.totalorder %s72, %s73
      %p87 = scmp.eq.s32.totalorder %s18, 1
      %p88 = por %p86, %p87
      %p90 = scmp.ne.s32.totalorder %s73, %s89
      %p91 = scmp.eq.s32.totalorder %s18, 0
      %p92 = por %p90, %p91
      %s93 = ssub.s32 %s12, %s19
      %p94 = scmp.eq.s32.totalorder %s93, 0
      %s96 = sadd.s32 %s95, 1
      %s97 = scalar_select %p94, %s95, %s96
      %p100 = pneg %p94
      %p101 = scmp.eq.s32.totalorder %s12, 1
      %p102 = por %p100, %p101
      %p103 = scmp.ne.s32.totalorder %s95, %s98
      %p104 = scmp.eq.s32.totalorder %s12, 0
      %p105 = por %p103, %p104
      %p106 = scmp.ne.s32.totalorder %s95, %s98
      %p107 = scmp.eq.s32.totalorder %s17, 1
      %p108 = por %p106, %p107
      %p109 = scmp.ne.s32.totalorder %s98, %s99
      %p110 = scmp.eq.s32.totalorder %s17, 0
      %p111 = por %p109, %p110
      %p112 = scmp.ne.s32.totalorder %s98, %s99
      %p113 = scmp.eq.s32.totalorder %s18, 1
      %p114 = por %p112, %p113
      %p116 = scmp.ne.s32.totalorder %s99, %s115
      %p117 = scmp.eq.s32.totalorder %s18, 0
      %p118 = por %p116, %p117
      %p119 = scmp.le.s32.totalorder 1, %s12
      %p120 = scmp.lt.s32.totalorder %s12, 3
      %p121 = pnand %p119, %p120
      %p122 = pneg %p121
      // Predicated region
      $region9: #{tpu_custom_call.1} parent=5 // pred_check
        _
      $region10: #{tpu_custom_call.1} parent=5 // pred_check_branch
        %124 = sbr.rel (%p121) target = $region12
      $region11: #{tpu_custom_call.1} parent=5 // pred_region
        %s125 = ssub.s32 %s12, 1
        // Predicated region
        $region13: #{tpu_custom_call.1} parent=11 // pred_check
          %p126 = pneg %p59
        $region14: #{tpu_custom_call.1} parent=11 // pred_check_branch
          %128 = sbr.rel (%p126) target = $region16
        $region15: #{tpu_custom_call.1} parent=11 // pred_region
          _
        $region16: #{tpu_custom_call.1} parent=11 // pred_fallthru
          _
      $region12: #{tpu_custom_call.1} parent=5 // pred_fallthru
        _
      %p129 = scmp.lt.s32.totalorder %s12, 2
      // Predicated region
      $region17: #{tpu_custom_call.1} parent=5 // pred_check
        %p130 = pneg %p129
      $region18: #{tpu_custom_call.1} parent=5 // pred_check_branch
        %132 = sbr.rel (%p130) target = $region20
      $region19: #{tpu_custom_call.1} parent=5 // pred_region
        // Predicated region
        $region21: #{tpu_custom_call.1} parent=19 // pred_check
          %p133 = pneg %p32
        $region22: #{tpu_custom_call.1} parent=19 // pred_check_branch
          %135 = sbr.rel (%p133) target = $region24
        $region23: #{tpu_custom_call.1} parent=19 // pred_region
          %s136 = smul.u32 3, %s12
          %p137 = scmp.lt.s32.totalorder %s136, 5
          %s138 = scalar_select %p137, %s136, 5
          %s139 = smul.addr %s138, 8
          %s140 = scalar_lea.vmem %s0, %s139
          %s141 = smul.u32 3, %s12
        $region24: #{tpu_custom_call.1} parent=19 // pred_fallthru
          _
        // Predicated region
        $region25: #{tpu_custom_call.1} parent=19 // pred_check
          %p142 = pneg %p79
        $region26: #{tpu_custom_call.1} parent=19 // pred_check_branch
          %144 = sbr.rel (%p142) target = $region28
        $region27: #{tpu_custom_call.1} parent=19 // pred_region
          %s145 = sand.u32 %s69, 1
          %s146 = scalar_lea.sflag [#allocation3], %s145
          %s147 = sand.u32 %s69, 1
          %s148 = smul.addr %s147, 48
          %s149 = scalar_lea.vmem [#allocation2], %s148
          %s150 = smul.u32 3, %s12
          %152 = vsyncadd %s146, 0
          %s153 = smul.addr %s150, 2
          %s154 = smul.addr %s153, 8
          %s155 = scalar_lea.hbm %s2, %s154
          %s156 = sshll.u32 %s155, 4
          %s157 = int_to_ptr.hbm [resolvable:$true] %s156
          %s158 = sshll.u32 %s149, 4
          %s159 = int_to_ptr.vmem [resolvable:$true] %s158
          %164 = dma.hbm_to_vmem [thread:$0]  %s157, 768, %s159, %s146, 256, 256, 16
        $region28: #{tpu_custom_call.1} parent=19 // pred_fallthru
          _
      $region20: #{tpu_custom_call.1} parent=5 // pred_fallthru
        _
      %p165 = scmp.le.s32.totalorder 1, %s12
      %p166 = scmp.lt.s32.totalorder %s12, 3
      %p167 = pnand %p165, %p166
      %p168 = pneg %p167
      // Predicated region
      $region29: #{tpu_custom_call.1} parent=5 // pred_check
        _
      $region30: #{tpu_custom_call.1} parent=5 // pred_check_branch
        %170 = sbr.rel (%p167) target = $region32
      $region31: #{tpu_custom_call.1} parent=5 // pred_region
        %s171 = ssub.s32 %s12, 1
        %s172 = sand.u32 %s72, 1
        %s173 = scalar_lea.sflag [#allocation3], %s172
        %s174 = sand.u32 %s72, 1
        %s175 = smul.addr %s174, 48
        %s176 = scalar_lea.vmem [#allocation2], %s175
        // Predicated region
        $region33: #{tpu_custom_call.1} parent=31 // pred_check
          %p177 = pneg %p85
        $region34: #{tpu_custom_call.1} parent=31 // pred_check_branch
          %179 = sbr.rel (%p177) target = $region36
        $region35: #{tpu_custom_call.1} parent=31 // pred_region
          %181 = dma.done %s173, 768
        $region36: #{tpu_custom_call.1} parent=31 // pred_fallthru
          _
        %s182 = smul.u32 3, %s17
        %p183 = scmp.lt.s32.totalorder %s182, 5
        %s184 = scalar_select %p183, %s182, 5
        %s185 = smul.addr %s184, 8
        %s186 = scalar_lea.vmem %s0, %s185
        %p187 = pneg %p38
        %p188 = pneg %p35
        %p189 = pneg %p59
        %p190 = pneg %p56
        %s191 = sand.u32 %s72, 1
        %s192 = scalar_lea.sflag [#allocation3], %s191
        %s193 = sand.u32 %s72, 1
        %s194 = smul.addr %s193, 48
        %s195 = scalar_lea.vmem [#allocation2], %s194
        %p196 = pneg %p85
        %p197 = pneg %p82
        %p198 = pneg %p111
        %p199 = pneg %p108
        %s200 = smul.u32 3, %s17
        %p201 = scmp.lt.s32.totalorder %s200, 5
        %s202 = scalar_select %p201, %s200, 5
        %s203 = smul.addr %s202, 32
        %s204 = smul.addr %s203, 8
        %s205 = scalar_lea.vmem %s3, %s204
        %s206 = smul.u32 3, %s17
        %p207 = scmp.lt.s32.totalorder %s206, 5
        %s208 = scalar_select %p207, %s206, 5
        %s209 = smul.addr %s208, 8
        %s210 = scalar_lea.vmem %s0, %s209
        %s211 = smul.u32 3, %s17
        %s212 = smul.u32 3, %s17
        %s213 = smul.u32 3, %s17
        %p214 = scmp.lt.s32.totalorder %s213, 5
        %s215 = scalar_select %p214, %s213, 5
        %s216 = smul.addr %s215, 32
        %s217 = smul.addr %s216, 8
        %s218 = scalar_lea.vmem %s3, %s217
        %s219 = smul.u32 3, %s17
        %v220 = vlaneseq
        %v221 = vshrl.u32 %v220, 7
        %vm222 = vcmp.ge.s32.totalorder %v221, 2
        %vm223 = vcmp.lt.s32.totalorder %v221, 4
        %vm224 = vmand %vm222, %vm223
        %v225 = vld [vmem:[%s176] sm:$0xff]
        %v226 = vld [vmem:[%s176 + $0x8] sm:$0xff]
        %v227 = vld [vmem:[%s176 + $0x10] sm:$0xff]
        %v228 = vld [vmem:[%s176 + $0x18] sm:$0xff]
        %v229 = vld [vmem:[%s176 + $0x20] sm:$0xff]
        %v230 = vld [vmem:[%s176 + $0x28] sm:$0xff]
        %v231 = vsub.f32 0.0, %v225
        %v232 = vsub.f32 0.0, %v226
        %v233 = vsub.f32 0.0, %v227
        %v234 = vsub.f32 0.0, %v228
        %v235 = vsub.f32 0.0, %v229
        %v236 = vsub.f32 0.0, %v230
        %v237 = vsel %vm224, %v225, %v231
        %v238 = vsel %vm224, %v226, %v232
        %v239 = vsel %vm224, %v227, %v233
        %v240 = vsel %vm224, %v228, %v234
        %v241 = vsel %vm224, %v229, %v235
        %v242 = vsel %vm224, %v230, %v236
        %v243 = vmul.f32 %v237, 1.442695
        %v244 = vpow.pop %v243
        %v245 = vmul.f32 %v238, 1.442695
        %v246 = vpow.pop %v245
        %v247 = vmul.f32 %v239, 1.442695
        %v248 = vpow.pop %v247
        %v249 = vmul.f32 %v240, 1.442695
        %v250 = vpow.pop %v249
        %v251 = vmul.f32 %v241, 1.442695
        %v252 = vpow.pop %v251
        %v253 = vmul.f32 %v242, 1.442695
        %v254 = vpow.pop %v253
        %v255 = vadd.f32 %v244, 1.0
        %v256 = vadd.f32 %v246, 1.0
        %v257 = vadd.f32 %v248, 1.0
        %v258 = vadd.f32 %v250, 1.0
        %v259 = vadd.f32 %v252, 1.0
        %v260 = vadd.f32 %v254, 1.0
        %v261 = vrcp.pop %v255
        %v262 = vmul.f32 %v255, %v261
        %v263 = vsub.f32 1.0, %v262
        %v264 = vmul.f32 %v261, %v263
        %v265 = vadd.f32 %v261, %v264
        %vm266 = vweird.f32 %v255
        %vm267 = vweird.f32 %v261
        %vm268 = vmor %vm266, %vm267
        %v269 = vsel %vm268, %v261, %v265
        %v270 = vand.u32 2147483647, %v255
        %vm271 = vcmp.eq.f32.partialorder %v270, 8.507059e+37
        %v272 = vand.u32 %v255, 2147483648
        %v273 = vor.u32 1.1754944e-38, %v272
        %v274 = vsel %vm271, %v273, %v269
        %v275 = vmul.f32 1.0, %v274
        %v276 = vrcp.pop %v256
        %v277 = vmul.f32 %v256, %v276
        %v278 = vsub.f32 1.0, %v277
        %v279 = vmul.f32 %v276, %v278
        %v280 = vadd.f32 %v276, %v279
        %vm281 = vweird.f32 %v256
        %vm282 = vweird.f32 %v276
        %vm283 = vmor %vm281, %vm282
        %v284 = vsel %vm283, %v276, %v280
        %v285 = vand.u32 2147483647, %v256
        %vm286 = vcmp.eq.f32.partialorder %v285, 8.507059e+37
        %v287 = vand.u32 %v256, 2147483648
        %v288 = vor.u32 1.1754944e-38, %v287
        %v289 = vsel %vm286, %v288, %v284
        %v290 = vmul.f32 1.0, %v289
        %v291 = vrcp.pop %v257
        %v292 = vmul.f32 %v257, %v291
        %v293 = vsub.f32 1.0, %v292
        %v294 = vmul.f32 %v291, %v293
        %v295 = vadd.f32 %v291, %v294
        %vm296 = vweird.f32 %v257
        %vm297 = vweird.f32 %v291
        %vm298 = vmor %vm296, %vm297
        %v299 = vsel %vm298, %v291, %v295
        %v300 = vand.u32 2147483647, %v257
        %vm301 = vcmp.eq.f32.partialorder %v300, 8.507059e+37
        %v302 = vand.u32 %v257, 2147483648
        %v303 = vor.u32 1.1754944e-38, %v302
        %v304 = vsel %vm301, %v303, %v299
        %v305 = vmul.f32 1.0, %v304
        %v306 = vrcp.pop %v258
        %v307 = vmul.f32 %v258, %v306
        %v308 = vsub.f32 1.0, %v307
        %v309 = vmul.f32 %v306, %v308
        %v310 = vadd.f32 %v306, %v309
        %vm311 = vweird.f32 %v258
        %vm312 = vweird.f32 %v306
        %vm313 = vmor %vm311, %vm312
        %v314 = vsel %vm313, %v306, %v310
        %v315 = vand.u32 2147483647, %v258
        %vm316 = vcmp.eq.f32.partialorder %v315, 8.507059e+37
        %v317 = vand.u32 %v258, 2147483648
        %v318 = vor.u32 1.1754944e-38, %v317
        %v319 = vsel %vm316, %v318, %v314
        %v320 = vmul.f32 1.0, %v319
        %v321 = vrcp.pop %v259
        %v322 = vmul.f32 %v259, %v321
        %v323 = vsub.f32 1.0, %v322
        %v324 = vmul.f32 %v321, %v323
        %v325 = vadd.f32 %v321, %v324
        %vm326 = vweird.f32 %v259
        %vm327 = vweird.f32 %v321
        %vm328 = vmor %vm326, %vm327
        %v329 = vsel %vm328, %v321, %v325
        %v330 = vand.u32 2147483647, %v259
        %vm331 = vcmp.eq.f32.partialorder %v330, 8.507059e+37
        %v332 = vand.u32 %v259, 2147483648
        %v333 = vor.u32 1.1754944e-38, %v332
        %v334 = vsel %vm331, %v333, %v329
        %v335 = vmul.f32 1.0, %v334
        %v336 = vrcp.pop %v260
        %v337 = vmul.f32 %v260, %v336
        %v338 = vsub.f32 1.0, %v337
        %v339 = vmul.f32 %v336, %v338
        %v340 = vadd.f32 %v336, %v339
        %vm341 = vweird.f32 %v260
        %vm342 = vweird.f32 %v336
        %vm343 = vmor %vm341, %vm342
        %v344 = vsel %vm343, %v336, %v340
        %v345 = vand.u32 2147483647, %v260
        %vm346 = vcmp.eq.f32.partialorder %v345, 8.507059e+37
        %v347 = vand.u32 %v260, 2147483648
        %v348 = vor.u32 1.1754944e-38, %v347
        %v349 = vsel %vm346, %v348, %v344
        %v350 = vmul.f32 1.0, %v349
        %v351 = vsel %vm224, %v244, %v275
        %v352 = vsel %vm224, %v246, %v290
        %v353 = vsel %vm224, %v248, %v305
        %v354 = vsel %vm224, %v250, %v320
        %v355 = vsel %vm224, %v252, %v335
        %v356 = vsel %vm224, %v254, %v350
        %v357 = vld [vmem:[%s210] sm:$0xff]
        %v358 = vld [vmem:[%s210 + $0x8] sm:$0xff]
        %v359 = vld [vmem:[%s210 + $0x10] sm:$0xff]
        %361 = vset.pattern.permute.xlu0 0
        %362 = vperm.xlu0 %361, %v357
        %v363 = vpop.permute.xlu0 %362
        %366 = vset.pattern.permute.xlu0 0
        %367 = vperm.xlu0 %366, %v358
        %v368 = vpop.permute.xlu0 %367
        %371 = vset.pattern.permute.xlu0 0
        %372 = vperm.xlu0 %371, %v359
        %v373 = vpop.permute.xlu0 %372
        %v375 = vmul.f32 %v351, %v363
        %v376 = vmul.f32 %v352, %v363
        %v377 = vmul.f32 %v353, %v368
        %v378 = vmul.f32 %v354, %v368
        %v379 = vmul.f32 %v355, %v373
        %v380 = vmul.f32 %v356, %v373
        %v381 = vld [vmem:[%s1] sm:$0xff]
        %v382 = vld [vmem:[%s1 + $0x8] sm:$0xff]
        %v383 = vadd.f32 %v375, %v381
        %v384 = vadd.f32 %v376, %v382
        %385 = vxpose.xlu0.b32.start [1/16] %v383, 128
        %386 = vxpose.xlu0.b32.cont [2/16] 0.0, 128
        %387 = vxpose.xlu0.b32.cont [3/16] 0.0, 128
        %388 = vxpose.xlu0.b32.cont [4/16] 0.0, 128
        %389 = vxpose.xlu0.b32.cont [5/16] 0.0, 128
        %390 = vxpose.xlu0.b32.cont [6/16] 0.0, 128
        %391 = vxpose.xlu0.b32.cont [7/16] 0.0, 128
        %392 = vxpose.xlu0.b32.cont [8/16] 0.0, 128
        %393 = vxpose.xlu0.b32.cont [9/16] 0.0, 128
        %394 = vxpose.xlu0.b32.cont [10/16] 0.0, 128
        %395 = vxpose.xlu0.b32.cont [11/16] 0.0, 128
        %396 = vxpose.xlu0.b32.cont [12/16] 0.0, 128
        %397 = vxpose.xlu0.b32.cont [13/16] 0.0, 128
        %398 = vxpose.xlu0.b32.cont [14/16] 0.0, 128
        %399 = vxpose.xlu0.b32.cont [15/16] 0.0, 128
        %400 = vxpose.xlu0.b32.end [16/16] 0.0, 128
        %v401 = vpop.trf.xlu0
        %v402 = vpop.trf.xlu0
        %v403 = vpop.trf.xlu0
        %v404 = vpop.trf.xlu0
        %v405 = vpop.trf.xlu0
        %v406 = vpop.trf.xlu0
        %v407 = vpop.trf.xlu0
        %v408 = vpop.trf.xlu0
        %v409 = vpop.trf.xlu0
        %v410 = vpop.trf.xlu0
        %v411 = vpop.trf.xlu0
        %v412 = vpop.trf.xlu0
        %v413 = vpop.trf.xlu0
        %v414 = vpop.trf.xlu0
        %v415 = vpop.trf.xlu0
        %v416 = vpop.trf.xlu0
        %417 = vxpose.xlu0.b32.start [1/16] %v384, 128
        %418 = vxpose.xlu0.b32.cont [2/16] 0.0, 128
        %419 = vxpose.xlu0.b32.cont [3/16] 0.0, 128
        %420 = vxpose.xlu0.b32.cont [4/16] 0.0, 128
        %421 = vxpose.xlu0.b32.cont [5/16] 0.0, 128
        %422 = vxpose.xlu0.b32.cont [6/16] 0.0, 128
        %423 = vxpose.xlu0.b32.cont [7/16] 0.0, 128
        %424 = vxpose.xlu0.b32.cont [8/16] 0.0, 128
        %425 = vxpose.xlu0.b32.cont [9/16] 0.0, 128
        %426 = vxpose.xlu0.b32.cont [10/16] 0.0, 128
        %427 = vxpose.xlu0.b32.cont [11/16] 0.0, 128
        %428 = vxpose.xlu0.b32.cont [12/16] 0.0, 128
        %429 = vxpose.xlu0.b32.cont [13/16] 0.0, 128
        %430 = vxpose.xlu0.b32.cont [14/16] 0.0, 128
        %431 = vxpose.xlu0.b32.cont [15/16] 0.0, 128
        %432 = vxpose.xlu0.b32.end [16/16] 0.0, 128
        %v433 = vpop.trf.xlu0
        %v434 = vpop.trf.xlu0
        %v435 = vpop.trf.xlu0
        %v436 = vpop.trf.xlu0
        %v437 = vpop.trf.xlu0
        %v438 = vpop.trf.xlu0
        %v439 = vpop.trf.xlu0
        %v440 = vpop.trf.xlu0
        %v441 = vpop.trf.xlu0
        %v442 = vpop.trf.xlu0
        %v443 = vpop.trf.xlu0
        %v444 = vpop.trf.xlu0
        %v445 = vpop.trf.xlu0
        %v446 = vpop.trf.xlu0
        %v447 = vpop.trf.xlu0
        %v448 = vpop.trf.xlu0
        %vm449 = vcmask 64512
        %450 = vst.msk [vmem:[%s218] sm:$0xff] %vm449, %v401
        %451 = vst.msk [vmem:[%s218 + $0x8] sm:$0xff] %vm449, %v402
        %452 = vst.msk [vmem:[%s218 + $0x10] sm:$0xff] %vm449, %v403
        %453 = vst.msk [vmem:[%s218 + $0x18] sm:$0xff] %vm449, %v404
        %454 = vst.msk [vmem:[%s218 + $0x20] sm:$0xff] %vm449, %v405
        %455 = vst.msk [vmem:[%s218 + $0x28] sm:$0xff] %vm449, %v406
        %456 = vst.msk [vmem:[%s218 + $0x30] sm:$0xff] %vm449, %v407
        %457 = vst.msk [vmem:[%s218 + $0x38] sm:$0xff] %vm449, %v408
        %458 = vst.msk [vmem:[%s218 + $0x40] sm:$0xff] %vm449, %v409
        %459 = vst.msk [vmem:[%s218 + $0x48] sm:$0xff] %vm449, %v410
        %460 = vst.msk [vmem:[%s218 + $0x50] sm:$0xff] %vm449, %v411
        %461 = vst.msk [vmem:[%s218 + $0x58] sm:$0xff] %vm449, %v412
        %462 = vst.msk [vmem:[%s218 + $0x60] sm:$0xff] %vm449, %v413
        %463 = vst.msk [vmem:[%s218 + $0x68] sm:$0xff] %vm449, %v414
        %464 = vst.msk [vmem:[%s218 + $0x70] sm:$0xff] %vm449, %v415
        %465 = vst.msk [vmem:[%s218 + $0x78] sm:$0xff] %vm449, %v416
        %466 = vst.msk [vmem:[%s218 + $0x80] sm:$0xff] %vm449, %v433
        %467 = vst.msk [vmem:[%s218 + $0x88] sm:$0xff] %vm449, %v434
        %468 = vst.msk [vmem:[%s218 + $0x90] sm:$0xff] %vm449, %v435
        %469 = vst.msk [vmem:[%s218 + $0x98] sm:$0xff] %vm449, %v436
        %470 = vst.msk [vmem:[%s218 + $0xa0] sm:$0xff] %vm449, %v437
        %471 = vst.msk [vmem:[%s218 + $0xa8] sm:$0xff] %vm449, %v438
        %472 = vst.msk [vmem:[%s218 + $0xb0] sm:$0xff] %vm449, %v439
        %473 = vst.msk [vmem:[%s218 + $0xb8] sm:$0xff] %vm449, %v440
        %474 = vst.msk [vmem:[%s218 + $0xc0] sm:$0xff] %vm449, %v441
        %475 = vst.msk [vmem:[%s218 + $0xc8] sm:$0xff] %vm449, %v442
        %476 = vst.msk [vmem:[%s218 + $0xd0] sm:$0xff] %vm449, %v443
        %477 = vst.msk [vmem:[%s218 + $0xd8] sm:$0xff] %vm449, %v444
        %478 = vst.msk [vmem:[%s218 + $0xe0] sm:$0xff] %vm449, %v445
        %479 = vst.msk [vmem:[%s218 + $0xe8] sm:$0xff] %vm449, %v446
        %480 = vst.msk [vmem:[%s218 + $0xf0] sm:$0xff] %vm449, %v447
        %481 = vst.msk [vmem:[%s218 + $0xf8] sm:$0xff] %vm449, %v448
        %v482 = vadd.f32 %v377, %v381
        %v483 = vadd.f32 %v378, %v382
        %484 = vxpose.xlu0.b32.start [1/16] %v482, 128
        %485 = vxpose.xlu0.b32.cont [2/16] 0.0, 128
        %486 = vxpose.xlu0.b32.cont [3/16] 0.0, 128
        %487 = vxpose.xlu0.b32.cont [4/16] 0.0, 128
        %488 = vxpose.xlu0.b32.cont [5/16] 0.0, 128
        %489 = vxpose.xlu0.b32.cont [6/16] 0.0, 128
        %490 = vxpose.xlu0.b32.cont [7/16] 0.0, 128
        %491 = vxpose.xlu0.b32.cont [8/16] 0.0, 128
        %492 = vxpose.xlu0.b32.cont [9/16] 0.0, 128
        %493 = vxpose.xlu0.b32.cont [10/16] 0.0, 128
        %494 = vxpose.xlu0.b32.cont [11/16] 0.0, 128
        %495 = vxpose.xlu0.b32.cont [12/16] 0.0, 128
        %496 = vxpose.xlu0.b32.cont [13/16] 0.0, 128
        %497 = vxpose.xlu0.b32.cont [14/16] 0.0, 128
        %498 = vxpose.xlu0.b32.cont [15/16] 0.0, 128
        %499 = vxpose.xlu0.b32.end [16/16] 0.0, 128
        %v500 = vpop.trf.xlu0
        %v501 = vpop.trf.xlu0
        %v502 = vpop.trf.xlu0
        %v503 = vpop.trf.xlu0
        %v504 = vpop.trf.xlu0
        %v505 = vpop.trf.xlu0
        %v506 = vpop.trf.xlu0
        %v507 = vpop.trf.xlu0
        %v508 = vpop.trf.xlu0
        %v509 = vpop.trf.xlu0
        %v510 = vpop.trf.xlu0
        %v511 = vpop.trf.xlu0
        %v512 = vpop.trf.xlu0
        %v513 = vpop.trf.xlu0
        %v514 = vpop.trf.xlu0
        %v515 = vpop.trf.xlu0
        %516 = vxpose.xlu0.b32.start [1/16] %v483, 128
        %517 = vxpose.xlu0.b32.cont [2/16] 0.0, 128
        %518 = vxpose.xlu0.b32.cont [3/16] 0.0, 128
        %519 = vxpose.xlu0.b32.cont [4/16] 0.0, 128
        %520 = vxpose.xlu0.b32.cont [5/16] 0.0, 128
        %521 = vxpose.xlu0.b32.cont [6/16] 0.0, 128
        %522 = vxpose.xlu0.b32.cont [7/16] 0.0, 128
        %523 = vxpose.xlu0.b32.cont [8/16] 0.0, 128
        %524 = vxpose.xlu0.b32.cont [9/16] 0.0, 128
        %525 = vxpose.xlu0.b32.cont [10/16] 0.0, 128
        %526 = vxpose.xlu0.b32.cont [11/16] 0.0, 128
        %527 = vxpose.xlu0.b32.cont [12/16] 0.0, 128
        %528 = vxpose.xlu0.b32.cont [13/16] 0.0, 128
        %529 = vxpose.xlu0.b32.cont [14/16] 0.0, 128
        %530 = vxpose.xlu0.b32.cont [15/16] 0.0, 128
        %531 = vxpose.xlu0.b32.end [16/16] 0.0, 128
        %v532 = vpop.trf.xlu0
        %v533 = vpop.trf.xlu0
        %v534 = vpop.trf.xlu0
        %v535 = vpop.trf.xlu0
        %v536 = vpop.trf.xlu0
        %v537 = vpop.trf.xlu0
        %v538 = vpop.trf.xlu0
        %v539 = vpop.trf.xlu0
        %v540 = vpop.trf.xlu0
        %v541 = vpop.trf.xlu0
        %v542 = vpop.trf.xlu0
        %v543 = vpop.trf.xlu0
        %v544 = vpop.trf.xlu0
        %v545 = vpop.trf.xlu0
        %v546 = vpop.trf.xlu0
        %v547 = vpop.trf.xlu0
        %s548 = scalar_lea.vmem %s218, 256
        %549 = vst.msk [vmem:[%s548] sm:$0xff] %vm449, %v500
        %550 = vst.msk [vmem:[%s548 + $0x8] sm:$0xff] %vm449, %v501
        %551 = vst.msk [vmem:[%s548 + $0x10] sm:$0xff] %vm449, %v502
        %552 = vst.msk [vmem:[%s548 + $0x18] sm:$0xff] %vm449, %v503
        %553 = vst.msk [vmem:[%s548 + $0x20] sm:$0xff] %vm449, %v504
        %554 = vst.msk [vmem:[%s548 + $0x28] sm:$0xff] %vm449, %v505
        %555 = vst.msk [vmem:[%s548 + $0x30] sm:$0xff] %vm449, %v506
        %556 = vst.msk [vmem:[%s548 + $0x38] sm:$0xff] %vm449, %v507
        %557 = vst.msk [vmem:[%s548 + $0x40] sm:$0xff] %vm449, %v508
        %558 = vst.msk [vmem:[%s548 + $0x48] sm:$0xff] %vm449, %v509
        %559 = vst.msk [vmem:[%s548 + $0x50] sm:$0xff] %vm449, %v510
        %560 = vst.msk [vmem:[%s548 + $0x58] sm:$0xff] %vm449, %v511
        %561 = vst.msk [vmem:[%s548 + $0x60] sm:$0xff] %vm449, %v512
        %562 = vst.msk [vmem:[%s548 + $0x68] sm:$0xff] %vm449, %v513
        %563 = vst.msk [vmem:[%s548 + $0x70] sm:$0xff] %vm449, %v514
        %564 = vst.msk [vmem:[%s548 + $0x78] sm:$0xff] %vm449, %v515
        %565 = vst.msk [vmem:[%s548 + $0x80] sm:$0xff] %vm449, %v532
        %566 = vst.msk [vmem:[%s548 + $0x88] sm:$0xff] %vm449, %v533
        %567 = vst.msk [vmem:[%s548 + $0x90] sm:$0xff] %vm449, %v534
        %568 = vst.msk [vmem:[%s548 + $0x98] sm:$0xff] %vm449, %v535
        %569 = vst.msk [vmem:[%s548 + $0xa0] sm:$0xff] %vm449, %v536
        %570 = vst.msk [vmem:[%s548 + $0xa8] sm:$0xff] %vm449, %v537
        %571 = vst.msk [vmem:[%s548 + $0xb0] sm:$0xff] %vm449, %v538
        %572 = vst.msk [vmem:[%s548 + $0xb8] sm:$0xff] %vm449, %v539
        %573 = vst.msk [vmem:[%s548 + $0xc0] sm:$0xff] %vm449, %v540
        %574 = vst.msk [vmem:[%s548 + $0xc8] sm:$0xff] %vm449, %v541
        %575 = vst.msk [vmem:[%s548 + $0xd0] sm:$0xff] %vm449, %v542
        %576 = vst.msk [vmem:[%s548 + $0xd8] sm:$0xff] %vm449, %v543
        %577 = vst.msk [vmem:[%s548 + $0xe0] sm:$0xff] %vm449, %v544
        %578 = vst.msk [vmem:[%s548 + $0xe8] sm:$0xff] %vm449, %v545
        %579 = vst.msk [vmem:[%s548 + $0xf0] sm:$0xff] %vm449, %v546
        %580 = vst.msk [vmem:[%s548 + $0xf8] sm:$0xff] %vm449, %v547
        %v581 = vadd.f32 %v379, %v381
        %v582 = vadd.f32 %v380, %v382
        %583 = vxpose.xlu0.b32.start [1/16] %v581, 128
        %584 = vxpose.xlu0.b32.cont [2/16] 0.0, 128
        %585 = vxpose.xlu0.b32.cont [3/16] 0.0, 128
        %586 = vxpose.xlu0.b32.cont [4/16] 0.0, 128
        %587 = vxpose.xlu0.b32.cont [5/16] 0.0, 128
        %588 = vxpose.xlu0.b32.cont [6/16] 0.0, 128
        %589 = vxpose.xlu0.b32.cont [7/16] 0.0, 128
        %590 = vxpose.xlu0.b32.cont [8/16] 0.0, 128
        %591 = vxpose.xlu0.b32.cont [9/16] 0.0, 128
        %592 = vxpose.xlu0.b32.cont [10/16] 0.0, 128
        %593 = vxpose.xlu0.b32.cont [11/16] 0.0, 128
        %594 = vxpose.xlu0.b32.cont [12/16] 0.0, 128
        %595 = vxpose.xlu0.b32.cont [13/16] 0.0, 128
        %596 = vxpose.xlu0.b32.cont [14/16] 0.0, 128
        %597 = vxpose.xlu0.b32.cont [15/16] 0.0, 128
        %598 = vxpose.xlu0.b32.end [16/16] 0.0, 128
        %v599 = vpop.trf.xlu0
        %v600 = vpop.trf.xlu0
        %v601 = vpop.trf.xlu0
        %v602 = vpop.trf.xlu0
        %v603 = vpop.trf.xlu0
        %v604 = vpop.trf.xlu0
        %v605 = vpop.trf.xlu0
        %v606 = vpop.trf.xlu0
        %v607 = vpop.trf.xlu0
        %v608 = vpop.trf.xlu0
        %v609 = vpop.trf.xlu0
        %v610 = vpop.trf.xlu0
        %v611 = vpop.trf.xlu0
        %v612 = vpop.trf.xlu0
        %v613 = vpop.trf.xlu0
        %v614 = vpop.trf.xlu0
        %615 = vxpose.xlu0.b32.start [1/16] %v582, 128
        %616 = vxpose.xlu0.b32.cont [2/16] 0.0, 128
        %617 = vxpose.xlu0.b32.cont [3/16] 0.0, 128
        %618 = vxpose.xlu0.b32.cont [4/16] 0.0, 128
        %619 = vxpose.xlu0.b32.cont [5/16] 0.0, 128
        %620 = vxpose.xlu0.b32.cont [6/16] 0.0, 128
        %621 = vxpose.xlu0.b32.cont [7/16] 0.0, 128
        %622 = vxpose.xlu0.b32.cont [8/16] 0.0, 128
        %623 = vxpose.xlu0.b32.cont [9/16] 0.0, 128
        %624 = vxpose.xlu0.b32.cont [10/16] 0.0, 128
        %625 = vxpose.xlu0.b32.cont [11/16] 0.0, 128
        %626 = vxpose.xlu0.b32.cont [12/16] 0.0, 128
        %627 = vxpose.xlu0.b32.cont [13/16] 0.0, 128
        %628 = vxpose.xlu0.b32.cont [14/16] 0.0, 128
        %629 = vxpose.xlu0.b32.cont [15/16] 0.0, 128
        %630 = vxpose.xlu0.b32.end [16/16] 0.0, 128
        %v631 = vpop.trf.xlu0
        %v632 = vpop.trf.xlu0
        %v633 = vpop.trf.xlu0
        %v634 = vpop.trf.xlu0
        %v635 = vpop.trf.xlu0
        %v636 = vpop.trf.xlu0
        %v637 = vpop.trf.xlu0
        %v638 = vpop.trf.xlu0
        %v639 = vpop.trf.xlu0
        %v640 = vpop.trf.xlu0
        %v641 = vpop.trf.xlu0
        %v642 = vpop.trf.xlu0
        %v643 = vpop.trf.xlu0
        %v644 = vpop.trf.xlu0
        %v645 = vpop.trf.xlu0
        %v646 = vpop.trf.xlu0
        %s647 = scalar_lea.vmem %s218, 512
        %648 = vst.msk [vmem:[%s647] sm:$0xff] %vm449, %v599
        %649 = vst.msk [vmem:[%s647 + $0x8] sm:$0xff] %vm449, %v600
        %650 = vst.msk [vmem:[%s647 + $0x10] sm:$0xff] %vm449, %v601
        %651 = vst.msk [vmem:[%s647 + $0x18] sm:$0xff] %vm449, %v602
        %652 = vst.msk [vmem:[%s647 + $0x20] sm:$0xff] %vm449, %v603
        %653 = vst.msk [vmem:[%s647 + $0x28] sm:$0xff] %vm449, %v604
        %654 = vst.msk [vmem:[%s647 + $0x30] sm:$0xff] %vm449, %v605
        %655 = vst.msk [vmem:[%s647 + $0x38] sm:$0xff] %vm449, %v606
        %656 = vst.msk [vmem:[%s647 + $0x40] sm:$0xff] %vm449, %v607
        %657 = vst.msk [vmem:[%s647 + $0x48] sm:$0xff] %vm449, %v608
        %658 = vst.msk [vmem:[%s647 + $0x50] sm:$0xff] %vm449, %v609
        %659 = vst.msk [vmem:[%s647 + $0x58] sm:$0xff] %vm449, %v610
        %660 = vst.msk [vmem:[%s647 + $0x60] sm:$0xff] %vm449, %v611
        %661 = vst.msk [vmem:[%s647 + $0x68] sm:$0xff] %vm449, %v612
        %662 = vst.msk [vmem:[%s647 + $0x70] sm:$0xff] %vm449, %v613
        %663 = vst.msk [vmem:[%s647 + $0x78] sm:$0xff] %vm449, %v614
        %664 = vst.msk [vmem:[%s647 + $0x80] sm:$0xff] %vm449, %v631
        %665 = vst.msk [vmem:[%s647 + $0x88] sm:$0xff] %vm449, %v632
        %666 = vst.msk [vmem:[%s647 + $0x90] sm:$0xff] %vm449, %v633
        %667 = vst.msk [vmem:[%s647 + $0x98] sm:$0xff] %vm449, %v634
        %668 = vst.msk [vmem:[%s647 + $0xa0] sm:$0xff] %vm449, %v635
        %669 = vst.msk [vmem:[%s647 + $0xa8] sm:$0xff] %vm449, %v636
        %670 = vst.msk [vmem:[%s647 + $0xb0] sm:$0xff] %vm449, %v637
        %671 = vst.msk [vmem:[%s647 + $0xb8] sm:$0xff] %vm449, %v638
        %672 = vst.msk [vmem:[%s647 + $0xc0] sm:$0xff] %vm449, %v639
        %673 = vst.msk [vmem:[%s647 + $0xc8] sm:$0xff] %vm449, %v640
        %674 = vst.msk [vmem:[%s647 + $0xd0] sm:$0xff] %vm449, %v641
        %675 = vst.msk [vmem:[%s647 + $0xd8] sm:$0xff] %vm449, %v642
        %676 = vst.msk [vmem:[%s647 + $0xe0] sm:$0xff] %vm449, %v643
        %677 = vst.msk [vmem:[%s647 + $0xe8] sm:$0xff] %vm449, %v644
        %678 = vst.msk [vmem:[%s647 + $0xf0] sm:$0xff] %vm449, %v645
        %679 = vst.msk [vmem:[%s647 + $0xf8] sm:$0xff] %vm449, %v646
        %s680 = smul.u32 3, %s17
        %p681 = scmp.lt.s32.totalorder %s680, 5
        %s682 = scalar_select %p681, %s680, 5
        %s683 = smul.addr %s682, 32
        %s684 = smul.addr %s683, 8
        %s685 = scalar_lea.vmem %s3, %s684
        // Predicated region
        $region37: #{tpu_custom_call.1} parent=31 // pred_check
          %p686 = pneg %p108
        $region38: #{tpu_custom_call.1} parent=31 // pred_check_branch
          %688 = sbr.rel (%p686) target = $region40
        $region39: #{tpu_custom_call.1} parent=31 // pred_region
          %s689 = smul.u32 3, %s17
        $region40: #{tpu_custom_call.1} parent=31 // pred_fallthru
          _
      $region32: #{tpu_custom_call.1} parent=5 // pred_fallthru
        _
      %p690 = scmp.le.s32.totalorder 2, %s12
      // Predicated region
      $region41: #{tpu_custom_call.1} parent=5 // pred_check
        %p691 = pneg %p690
      $region42: #{tpu_custom_call.1} parent=5 // pred_check_branch
        %693 = sbr.rel (%p691) target = $region44
      $region43: #{tpu_custom_call.1} parent=5 // pred_region
        %s694 = ssub.s32 %s12, 2
        // Predicated region
        $region45: #{tpu_custom_call.1} parent=43 // pred_check
          %p695 = pneg %p114
        $region46: #{tpu_custom_call.1} parent=43 // pred_check_branch
          %697 = sbr.rel (%p695) target = $region48
        $region47: #{tpu_custom_call.1} parent=43 // pred_region
          %s698 = smul.u32 3, %s18
          %p699 = scmp.lt.s32.totalorder %s698, 5
          %s700 = scalar_select %p699, %s698, 5
          %s701 = smul.addr %s700, 32
          %s702 = smul.addr %s701, 8
          %s703 = scalar_lea.vmem %s3, %s702
        $region48: #{tpu_custom_call.1} parent=43 // pred_fallthru
          _
      $region44: #{tpu_custom_call.1} parent=5 // pred_fallthru
        _
    $region6: #{tpu_custom_call.1} parent=1 // loop_footer
      %s16 = sadd.s32 1, %s12
    $region7: #{tpu_custom_call.1} parent=1 // loop_footer_branch
      %11 = sbr.rel target = $region3
    $region8: #{tpu_custom_call.1} parent=1 // loop_exit
      _
    %704 = vsyncpa [#allocation3], 1
    %s705 = scalar_lea.sflag [#allocation3], 1
    %706 = vsyncpa %s705, 1

</llo_original>
